<compile_context>
chip_gen: v5e
topology: v5e:2x2
jax: 0.10.0
libtpu: 0.0.40
codegen_flags: <defaults>
</compile_context>

<pallas_src>
import jax
import jax.numpy as jnp
from jax import lax
from jax.experimental import pallas as pl
from jax.experimental.pallas import tpu as pltpu

# ------------------------------ model config ------------------------------
N_NODES = 16
SCRNA_DIM = 24       # scrna_feat_dim
ATAC_DIM = 16        # atac_feat_dim
EDGE_CH = 8          # edge_channels
FUSION_DIM = 32      # fusion_dim (GraFrank hidden_channels)
HIDDEN_DIM = 16      # hidden_dim (gc1 output)
NUM_LAYERS = 2

IN_CAT = SCRNA_DIM + ATAC_DIM        # 40  (lane-concat of both modality inputs)
D2 = 2 * FUSION_DIM                  # 64  (lane-concat of both modality embeddings)

# ------------------------- weight-slab row layout -------------------------
SLAB_LANES = 4 * FUSION_DIM          # 128 (one full lane group)
R_WE   = 0                           # [8, 128]   all four lin_l edge-weight tiles
R_WL0  = R_WE + EDGE_CH              # [40, 64]   blockdiag lin_l (x part), layer 0
R_WR0  = R_WL0 + IN_CAT              # [40, 64]   blockdiag lin_r,           layer 0
R_WL1  = R_WR0 + IN_CAT              # [64, 64]   blockdiag lin_l (x part), layer 1
R_WR1  = R_WL1 + D2                  # [64, 64]   blockdiag lin_r,           layer 1
R_AW1  = R_WR1 + D2                  # [64, 64]   blockdiag(attn_W1, attn_W1)
R_WGC  = R_AW1 + D2                  # [32, 16]   GraphConvolution weight
R_B0   = R_WGC + FUSION_DIM          # [1, 64]    fused bias, layer 0 (both modalities)
R_B1   = R_B0 + 1                    # [1, 64]    fused bias, layer 1
R_AB1  = R_B1 + 1                    # [1, 64]    [attn_b1 | attn_b1]
R_AW2  = R_AB1 + 1                   # [1, 64]    [attn_w2 | attn_w2]
SLAB_ROWS = ((R_AW2 + 1 + 7) // 8) * 8   # 320 (8-row aligned)


# ------------------------- single fused forward kernel -------------------------
def _fused_forward_kernel(xcat_ref, A_ref, M_ref, eattr_ref, adjn_ref, slab_ref, o_ref):
    f32 = jnp.float32

    # zero-cost static slices of the packed weight slab
    We_all = slab_ref[R_WE:R_WE + EDGE_CH, :]                     # [8, 128]
    Wl0    = slab_ref[R_WL0:R_WL0 + IN_CAT, 0:D2]                 # [40, 64]
    Wr0    = slab_ref[R_WR0:R_WR0 + IN_CAT, 0:D2]                 # [40, 64]
    Wl1    = slab_ref[R_WL1:R_WL1 + D2, 0:D2]                     # [64, 64]
    Wr1    = slab_ref[R_WR1:R_WR1 + D2, 0:D2]                     # [64, 64]
    W1blk  = slab_ref[R_AW1:R_AW1 + D2, 0:D2]                     # [64, 64]
    Wgc    = slab_ref[R_WGC:R_WGC + FUSION_DIM, 0:HIDDEN_DIM]     # [32, 16]
    bias0  = slab_ref[R_B0:R_B0 + 1, 0:D2]                        # [1, 64]
    bias1  = slab_ref[R_B1:R_B1 + 1, 0:D2]                        # [1, 64]
    ab1    = slab_ref[R_AB1:R_AB1 + 1, 0:D2]                      # [1, 64]
    aw2    = slab_ref[R_AW2:R_AW2 + 1, 0:D2]                      # [1, 64]

    xcat = xcat_ref[...]                                          # [N, 40]
    A = A_ref[...]                                                # [N, N] mean-agg operator
    adjn = adjn_ref[...]                                          # [N, N] sym-normalized adj

    # mean of incoming link features once, then ONE 128-lane dot covers all four
    # (layer, modality) edge-weight contributions.
    agg_e = jnp.dot(M_ref[...], eattr_ref[...], preferred_element_type=f32)      # [N, 8]
    agg_e_all = jnp.dot(agg_e, We_all, preferred_element_type=f32)                # [N, 128]
    e_contrib0 = agg_e_all[:, 0:D2]                                               # layer 0
    e_contrib1 = agg_e_all[:, D2:2 * D2]                                          # layer 1

    # ---- GraFrankConv layer 0, both modalities via block-diagonal weights ----
    agg_x0 = jnp.dot(A, xcat, preferred_element_type=f32)                         # [N, 40]
    h0 = (jnp.dot(agg_x0, Wl0, preferred_element_type=f32)
          + jnp.dot(xcat, Wr0, preferred_element_type=f32)
          + e_contrib0 + bias0)
    h0 = jnp.maximum(h0, 0.0)                                                     # relu; dropout = id (eval)

    # ---- GraFrankConv layer 1 (no relu on the final layer) ----
    agg_x1 = jnp.dot(A, h0, preferred_element_type=f32)                           # [N, 64]
    h1 = (jnp.dot(agg_x1, Wl1, preferred_element_type=f32)
          + jnp.dot(h0, Wr1, preferred_element_type=f32)
          + e_contrib1 + bias1)                                                   # [N, 64] = [e0 | e1]

    # ---- cross-modality attention, both modalities batched through shared W1 ----
    h_att = jnp.tanh(jnp.dot(h1, W1blk, preferred_element_type=f32) + ab1)        # [N, 64]
    sc = h_att * aw2                                                              # VPU mul + lane reduce
    s0 = jnp.sum(sc[:, 0:FUSION_DIM], axis=-1, keepdims=True)                     # [N, 1]
    s1 = jnp.sum(sc[:, FUSION_DIM:D2], axis=-1, keepdims=True)                    # [N, 1]
    m = jnp.maximum(s0, s1)
    a0 = jnp.exp(s0 - m)
    a1 = jnp.exp(s1 - m)
    inv = pl.reciprocal(a0 + a1, approx=True)                                     # EUP slot
    e0 = h1[:, 0:FUSION_DIM]
    e1 = h1[:, FUSION_DIM:D2]
    fused = (a0 * e0 + a1 * e1) * inv                                             # [N, FUSION_DIM]

    # ---- GraphConvolution: relu(A_norm @ (X @ W)) ----
    support = jnp.dot(fused, Wgc, preferred_element_type=f32)                     # [N, HIDDEN]
    z = jnp.maximum(jnp.dot(adjn, support, preferred_element_type=f32), 0.0)

    # ---- InnerProductDecoder: sigmoid(Z @ Z^T), contracting last dims ----
    zz = lax.dot_general(z, z, (((1,), (1,)), ((), ())), preferred_element_type=f32)
    o_ref[...] = jax.nn.sigmoid(zz).astype(o_ref.dtype)


# ------------------------------ parameters ------------------------------
def init_params(key):
    cnt = [0]

    def nk():
        cnt[0] += 1
        return jax.random.fold_in(key, cnt[0])

    def nrm(k, shape, scale=0.1):
        return scale * jax.random.normal(k, shape, jnp.float32)

    params = {}
    dims = [SCRNA_DIM, ATAC_DIM]                       # input_dim_list
    for k, inp in enumerate(dims):
        for i in range(NUM_LAYERS):
            d_in = inp if i == 0 else FUSION_DIM
            params[f"mod{k}_l{i}"] = {
                "Wl": nrm(nk(), (d_in + EDGE_CH, FUSION_DIM)),   # lin_l
                "bl": nrm(nk(), (FUSION_DIM,), 0.01),
                "Wr": nrm(nk(), (d_in, FUSION_DIM)),             # lin_r
                "br": nrm(nk(), (FUSION_DIM,), 0.01),
            }
    params["attn_W1"] = nrm(nk(), (FUSION_DIM, FUSION_DIM))
    params["attn_b1"] = nrm(nk(), (FUSION_DIM,), 0.01)
    params["attn_w2"] = nrm(nk(), (FUSION_DIM, 1))
    params["W_gc"] = nrm(nk(), (FUSION_DIM, HIDDEN_DIM))
    return params


# ---------------------- trace-time weight packing (glue) ----------------------
def _block_diag(a, b):
    ra, ca = a.shape
    rb, cb = b.shape
    top = jnp.concatenate([a, jnp.zeros((ra, cb), jnp.float32)], axis=1)
    bot = jnp.concatenate([jnp.zeros((rb, ca), jnp.float32), b], axis=1)
    return jnp.concatenate([top, bot], axis=0)


def _pack_weight_slab(params):
    dims = [SCRNA_DIM, ATAC_DIM]

    def split(k, i):
        p = params[f"mod{k}_l{i}"]
        d_in = dims[k] if i == 0 else FUSION_DIM
        # lin_l weight split into x-part / e-part; biases of lin_l and lin_r fuse.
        return p["Wl"][:d_in], p["Wl"][d_in:], p["Wr"], (p["bl"] + p["br"])

    w00xl, w00el, w00r, b00 = split(0, 0)
    w10xl, w10el, w10r, b10 = split(1, 0)
    w01xl, w01el, w01r, b01 = split(0, 1)
    w11xl, w11el, w11r, b11 = split(1, 1)

    Wl0 = _block_diag(w00xl, w10xl)                               # [40, 64]
    Wr0 = _block_diag(w00r, w10r)                                 # [40, 64]
    Wl1 = _block_diag(w01xl, w11xl)                               # [64, 64]
    Wr1 = _block_diag(w01r, w11r)                                 # [64, 64]
    We_all = jnp.concatenate([w00el, w10el, w01el, w11el], axis=1)  # [8, 128]
    bias0 = jnp.concatenate([b00, b10])                           # [64]
    bias1 = jnp.concatenate([b01, b11])                           # [64]

    W1 = params["attn_W1"]
    W1blk = _block_diag(W1, W1)                                   # [64, 64]
    ab1 = jnp.concatenate([params["attn_b1"], params["attn_b1"]])         # [64]
    w2 = params["attn_w2"][:, 0]
    aw2 = jnp.concatenate([w2, w2])                               # [64]

    slab = jnp.zeros((SLAB_ROWS, SLAB_LANES), jnp.float32)
    slab = slab.at[R_WE:R_WE + EDGE_CH, 0:4 * FUSION_DIM].set(We_all)
    slab = slab.at[R_WL0:R_WL0 + IN_CAT, 0:D2].set(Wl0)
    slab = slab.at[R_WR0:R_WR0 + IN_CAT, 0:D2].set(Wr0)
    slab = slab.at[R_WL1:R_WL1 + D2, 0:D2].set(Wl1)
    slab = slab.at[R_WR1:R_WR1 + D2, 0:D2].set(Wr1)
    slab = slab.at[R_AW1:R_AW1 + D2, 0:D2].set(W1blk)
    slab = slab.at[R_WGC:R_WGC + FUSION_DIM, 0:HIDDEN_DIM].set(params["W_gc"])
    slab = slab.at[R_B0, 0:D2].set(bias0)
    slab = slab.at[R_B1, 0:D2].set(bias1)
    slab = slab.at[R_AB1, 0:D2].set(ab1)
    slab = slab.at[R_AW2, 0:D2].set(aw2)
    return slab


# ------------------------------ full forward (fused Pallas) ------------------------------
def grafrank_model_ae_forward(params, atac_feature, scrna_feature, adj_norm,
                              edge_index, edge_attr):
    N = scrna_feature.shape[0]
    E = edge_attr.shape[0]

    # glue: dense mean-aggregation operators from edge_index (PyG: src -> dst)
    src, dst = edge_index[0], edge_index[1]
    deg = jnp.zeros((N,), jnp.float32).at[dst].add(1.0)
    inv_deg = jnp.where(deg > 0, 1.0 / deg, 0.0)
    A_mean = (jnp.zeros((N, N), jnp.float32).at[dst, src].add(1.0)) * inv_deg[:, None]
    M_mean = (jnp.zeros((N, E), jnp.float32).at[dst, jnp.arange(E)].add(1.0)) * inv_deg[:, None]

    # pack features (lane-concat) and all weights (one slab) at trace time
    x_cat = jnp.concatenate([scrna_feature, atac_feature], axis=1).astype(jnp.float32)
    slab = _pack_weight_slab(params)

    inputs = [x_cat, A_mean, M_mean,
              edge_attr.astype(jnp.float32),
              adj_norm.astype(jnp.float32),
              slab]

    # single grid step; every operand is a full-extent block resident in VMEM
    in_specs = [pl.BlockSpec(a.shape, lambda i: (0, 0)) for a in inputs]
    out = pl.pallas_call(
        _fused_forward_kernel,
        out_shape=jax.ShapeDtypeStruct((N, N), jnp.float32),
        grid=(1,),
        in_specs=in_specs,
        out_specs=pl.BlockSpec((N, N), lambda i: (0, 0)),
        compiler_params=pltpu.CompilerParams(
            dimension_semantics=("arbitrary",)),
    )(*inputs)
    return out


forward_jit = jax.jit(grafrank_model_ae_forward)


# ------------------------------ pure-JAX reference ------------------------------
def reference_forward(params, atac_feature, scrna_feature, adj_norm, edge_index, edge_attr):
    N = scrna_feature.shape[0]
    E = edge_attr.shape[0]
    x = jnp.concatenate([scrna_feature, atac_feature], axis=1)
    x_list = [x[:, :SCRNA_DIM], x[:, SCRNA_DIM:]]
    src, dst = edge_index[0], edge_index[1]
    deg = jnp.zeros((N,), jnp.float32).at[dst].add(1.0)
    inv_deg = jnp.where(deg > 0, 1.0 / deg, 0.0)
    A_mean = (jnp.zeros((N, N), jnp.float32).at[dst, src].add(1.0)) * inv_deg[:, None]
    M_mean = (jnp.zeros((N, E), jnp.float32).at[dst, jnp.arange(E)].add(1.0)) * inv_deg[:, None]
    agg_e = M_mean @ edge_attr
    embs = []
    for k in range(2):
        emb = x_list[k]
        for i in range(NUM_LAYERS):
            p = params[f"mod{k}_l{i}"]
            agg = jnp.concatenate([A_mean @ emb, agg_e], axis=1)
            new = agg @ p["Wl"] + p["bl"] + emb @ p["Wr"] + p["br"]
            emb = jnp.maximum(new, 0.0) if i != NUM_LAYERS - 1 else new
        embs.append(emb)
    stack = jnp.stack(embs, axis=1)                              # [N, 2, D]
    h = jnp.tanh(stack @ params["attn_W1"] + params["attn_b1"])
    s = (h @ params["attn_w2"])[..., 0]                          # [N, 2]
    alpha = jax.nn.softmax(s, axis=1)
    fused = (alpha[..., None] * stack).sum(axis=1)
    z = jnp.maximum(adj_norm @ (fused @ params["W_gc"]), 0.0)
    return jax.nn.sigmoid(z @ z.T)


# ------------------------------ main ------------------------------
if __name__ == "__main__":
    key = jax.random.PRNGKey(0)
    N = N_NODES

    # ring graph (both directions) + self loops; these are exactly adj_norm's nonzeros
    src_list, dst_list = [], []
    for i in range(N):
        j = (i + 1) % N
        src_list += [i, j, i]
        dst_list += [j, i, i]
    edge_index = jnp.array([src_list, dst_list], dtype=jnp.int32)
    E = edge_index.shape[1]

    k1, k2, k3, kp = jax.random.split(key, 4)
    atac_feature = jax.random.normal(k1, (N, ATAC_DIM), jnp.float32)
    scrna_feature = jax.random.normal(k2, (N, SCRNA_DIM), jnp.float32)
    edge_attr = jax.random.normal(k3, (E, EDGE_CH), jnp.float32)

    # symmetric-normalized dense adjacency D^-1/2 (A + I) D^-1/2
    A = jnp.zeros((N, N), jnp.float32).at[edge_index[1], edge_index[0]].add(1.0)
    dinv = 1.0 / jnp.sqrt(A.sum(axis=1))
    adj_norm = A * dinv[:, None] * dinv[None, :]

    params = init_params(kp)

    out = forward_jit(params, atac_feature, scrna_feature, adj_norm,
                      edge_index, edge_attr)
    out = jax.block_until_ready(out)

    ref = reference_forward(params, atac_feature, scrna_feature, adj_norm,
                            edge_index, edge_attr)

    assert out.shape == (N, N)
    assert bool(jnp.all(jnp.isfinite(out)))
    assert bool(jnp.allclose(out, ref, atol=2e-3, rtol=2e-3)), "mismatch vs JAX reference"
    print("KERNEL_OK")
</pallas_src>

<mosaic_0001>
module attributes {stable_mosaic.version = 11 : i64} {
  func.func @_fused_forward_kernel(%arg0: i32, %arg1: memref<16x40xf32, #tpu.memory_space<vmem>>, %arg2: memref<16x16xf32, #tpu.memory_space<vmem>>, %arg3: memref<16x48xf32, #tpu.memory_space<vmem>>, %arg4: memref<48x8xf32, #tpu.memory_space<vmem>>, %arg5: memref<16x16xf32, #tpu.memory_space<vmem>>, %arg6: memref<320x128xf32, #tpu.memory_space<vmem>>, %arg7: memref<16x16xf32, #tpu.memory_space<vmem>>) attributes {dimension_semantics = [#tpu.dimension_semantics<arbitrary>], iteration_bounds = array<i64: 1>, scalar_prefetch = 0 : i64, scratch_operands = 0 : i64, tpu.core_type = #tpu.core_type<tc>, window_params = [{pipeline_mode = #tpu.pipeline_mode<synchronous>, transform_indices = @transform_0, window_bounds = array<i64: 16, 40>}, {pipeline_mode = #tpu.pipeline_mode<synchronous>, transform_indices = @transform_1, window_bounds = array<i64: 16, 16>}, {pipeline_mode = #tpu.pipeline_mode<synchronous>, transform_indices = @transform_2, window_bounds = array<i64: 16, 48>}, {pipeline_mode = #tpu.pipeline_mode<synchronous>, transform_indices = @transform_3, window_bounds = array<i64: 48, 8>}, {pipeline_mode = #tpu.pipeline_mode<synchronous>, transform_indices = @transform_4, window_bounds = array<i64: 16, 16>}, {pipeline_mode = #tpu.pipeline_mode<synchronous>, transform_indices = @transform_5, window_bounds = array<i64: 320, 128>}, {pipeline_mode = #tpu.pipeline_mode<synchronous>, transform_indices = @transform_6, window_bounds = array<i64: 16, 16>}]} {
    %c0 = arith.constant 0 : index
    %c0_0 = arith.constant 0 : index
    %0 = vector.load %arg6[%c0, %c0_0] : memref<320x128xf32, #tpu.memory_space<vmem>>, vector<8x128xf32>
    %c8 = arith.constant 8 : index
    %c0_1 = arith.constant 0 : index
    %1 = vector.load %arg6[%c8, %c0_1] : memref<320x128xf32, #tpu.memory_space<vmem>>, vector<40x64xf32>
    %c48 = arith.constant 48 : index
    %c0_2 = arith.constant 0 : index
    %2 = vector.load %arg6[%c48, %c0_2] : memref<320x128xf32, #tpu.memory_space<vmem>>, vector<40x64xf32>
    %c88 = arith.constant 88 : index
    %c0_3 = arith.constant 0 : index
    %3 = vector.load %arg6[%c88, %c0_3] : memref<320x128xf32, #tpu.memory_space<vmem>>, vector<64x64xf32>
    %c152 = arith.constant 152 : index
    %c0_4 = arith.constant 0 : index
    %4 = vector.load %arg6[%c152, %c0_4] : memref<320x128xf32, #tpu.memory_space<vmem>>, vector<64x64xf32>
    %c216 = arith.constant 216 : index
    %c0_5 = arith.constant 0 : index
    %5 = vector.load %arg6[%c216, %c0_5] : memref<320x128xf32, #tpu.memory_space<vmem>>, vector<64x64xf32>
    %c280 = arith.constant 280 : index
    %c0_6 = arith.constant 0 : index
    %6 = vector.load %arg6[%c280, %c0_6] : memref<320x128xf32, #tpu.memory_space<vmem>>, vector<32x16xf32>
    %c312 = arith.constant 312 : index
    %c0_7 = arith.constant 0 : index
    %7 = vector.load %arg6[%c312, %c0_7] : memref<320x128xf32, #tpu.memory_space<vmem>>, vector<1x64xf32>
    %c313 = arith.constant 313 : index
    %c0_8 = arith.constant 0 : index
    %8 = vector.load %arg6[%c313, %c0_8] : memref<320x128xf32, #tpu.memory_space<vmem>>, vector<1x64xf32>
    %c314 = arith.constant 314 : index
    %c0_9 = arith.constant 0 : index
    %9 = vector.load %arg6[%c314, %c0_9] : memref<320x128xf32, #tpu.memory_space<vmem>>, vector<1x64xf32>
    %c315 = arith.constant 315 : index
    %c0_10 = arith.constant 0 : index
    %10 = vector.load %arg6[%c315, %c0_10] : memref<320x128xf32, #tpu.memory_space<vmem>>, vector<1x64xf32>
    %c0_11 = arith.constant 0 : index
    %c0_12 = arith.constant 0 : index
    %11 = vector.load %arg1[%c0_11, %c0_12] : memref<16x40xf32, #tpu.memory_space<vmem>>, vector<16x40xf32>
    %c0_13 = arith.constant 0 : index
    %c0_14 = arith.constant 0 : index
    %12 = vector.load %arg2[%c0_13, %c0_14] : memref<16x16xf32, #tpu.memory_space<vmem>>, vector<16x16xf32>
    %c0_15 = arith.constant 0 : index
    %c0_16 = arith.constant 0 : index
    %13 = vector.load %arg5[%c0_15, %c0_16] : memref<16x16xf32, #tpu.memory_space<vmem>>, vector<16x16xf32>
    %c0_17 = arith.constant 0 : index
    %c0_18 = arith.constant 0 : index
    %14 = vector.load %arg3[%c0_17, %c0_18] : memref<16x48xf32, #tpu.memory_space<vmem>>, vector<16x48xf32>
    %c0_19 = arith.constant 0 : index
    %c0_20 = arith.constant 0 : index
    %15 = vector.load %arg4[%c0_19, %c0_20] : memref<48x8xf32, #tpu.memory_space<vmem>>, vector<48x8xf32>
    %cst = arith.constant dense<0.000000e+00> : vector<16x8xf32>
    %16 = tpu.matmul %14, %15, %cst {dimension_numbers = #tpu.dot_dimension_numbers<[1], [0], [0], [1], [0, 0, 1, 1], [], []>} : vector<16x48xf32>, vector<48x8xf32>, vector<16x8xf32> -> vector<16x8xf32>
    %cst_21 = arith.constant dense<0.000000e+00> : vector<16x128xf32>
    %17 = tpu.matmul %16, %0, %cst_21 {dimension_numbers = #tpu.dot_dimension_numbers<[1], [0], [0], [1], [0, 0, 1, 1], [], []>} : vector<16x8xf32>, vector<8x128xf32>, vector<16x128xf32> -> vector<16x128xf32>
    %18 = vector.extract_strided_slice %17 {offsets = [0, 0], sizes = [16, 64], strides = [1, 1]} : vector<16x128xf32> to vector<16x64xf32>
    %19 = vector.extract_strided_slice %17 {offsets = [0, 64], sizes = [16, 64], strides = [1, 1]} : vector<16x128xf32> to vector<16x64xf32>
    %cst_22 = arith.constant dense<0.000000e+00> : vector<16x40xf32>
    %20 = tpu.matmul %12, %11, %cst_22 {dimension_numbers = #tpu.dot_dimension_numbers<[1], [0], [0], [1], [0, 0, 1, 1], [], []>} : vector<16x16xf32>, vector<16x40xf32>, vector<16x40xf32> -> vector<16x40xf32>
    %cst_23 = arith.constant dense<0.000000e+00> : vector<16x64xf32>
    %21 = tpu.matmul %20, %1, %cst_23 {dimension_numbers = #tpu.dot_dimension_numbers<[1], [0], [0], [1], [0, 0, 1, 1], [], []>} : vector<16x40xf32>, vector<40x64xf32>, vector<16x64xf32> -> vector<16x64xf32>
    %cst_24 = arith.constant dense<0.000000e+00> : vector<16x64xf32>
    %22 = tpu.matmul %11, %2, %cst_24 {dimension_numbers = #tpu.dot_dimension_numbers<[1], [0], [0], [1], [0, 0, 1, 1], [], []>} : vector<16x40xf32>, vector<40x64xf32>, vector<16x64xf32> -> vector<16x64xf32>
    %23 = arith.addf %21, %22 : vector<16x64xf32>
    %24 = arith.addf %23, %18 : vector<16x64xf32>
    %25 = vector.broadcast %7 : vector<1x64xf32> to vector<16x64xf32>
    %26 = arith.addf %24, %25 : vector<16x64xf32>
    %cst_25 = arith.constant 0.000000e+00 : f32
    %27 = vector.broadcast %cst_25 : f32 to vector<16x64xf32>
    %28 = arith.maximumf %26, %27 : vector<16x64xf32>
    %cst_26 = arith.constant dense<0.000000e+00> : vector<16x64xf32>
    %29 = tpu.matmul %12, %28, %cst_26 {dimension_numbers = #tpu.dot_dimension_numbers<[1], [0], [0], [1], [0, 0, 1, 1], [], []>} : vector<16x16xf32>, vector<16x64xf32>, vector<16x64xf32> -> vector<16x64xf32>
    %cst_27 = arith.constant dense<0.000000e+00> : vector<16x64xf32>
    %30 = tpu.matmul %29, %3, %cst_27 {dimension_numbers = #tpu.dot_dimension_numbers<[1], [0], [0], [1], [0, 0, 1, 1], [], []>} : vector<16x64xf32>, vector<64x64xf32>, vector<16x64xf32> -> vector<16x64xf32>
    %cst_28 = arith.constant dense<0.000000e+00> : vector<16x64xf32>
    %31 = tpu.matmul %28, %4, %cst_28 {dimension_numbers = #tpu.dot_dimension_numbers<[1], [0], [0], [1], [0, 0, 1, 1], [], []>} : vector<16x64xf32>, vector<64x64xf32>, vector<16x64xf32> -> vector<16x64xf32>
    %32 = arith.addf %30, %31 : vector<16x64xf32>
    %33 = arith.addf %32, %19 : vector<16x64xf32>
    %34 = vector.broadcast %8 : vector<1x64xf32> to vector<16x64xf32>
    %35 = arith.addf %33, %34 : vector<16x64xf32>
    %cst_29 = arith.constant dense<0.000000e+00> : vector<16x64xf32>
    %36 = tpu.matmul %35, %5, %cst_29 {dimension_numbers = #tpu.dot_dimension_numbers<[1], [0], [0], [1], [0, 0, 1, 1], [], []>} : vector<16x64xf32>, vector<64x64xf32>, vector<16x64xf32> -> vector<16x64xf32>
    %37 = vector.broadcast %9 : vector<1x64xf32> to vector<16x64xf32>
    %38 = arith.addf %36, %37 : vector<16x64xf32>
    %39 = math.tanh %38 : vector<16x64xf32>
    %40 = vector.broadcast %10 : vector<1x64xf32> to vector<16x64xf32>
    %41 = arith.mulf %39, %40 : vector<16x64xf32>
    %42 = vector.extract_strided_slice %41 {offsets = [0, 0], sizes = [16, 32], strides = [1, 1]} : vector<16x64xf32> to vector<16x32xf32>
    %cst_30 = arith.constant dense<0.000000e+00> : vector<16xf32>
    %43 = vector.multi_reduction <add>, %42, %cst_30 [1] : vector<16x32xf32> to vector<16xf32>
    %44 = vector.shape_cast %43 : vector<16xf32> to vector<16x1xf32>
    %45 = vector.extract_strided_slice %41 {offsets = [0, 32], sizes = [16, 32], strides = [1, 1]} : vector<16x64xf32> to vector<16x32xf32>
    %cst_31 = arith.constant dense<0.000000e+00> : vector<16xf32>
    %46 = vector.multi_reduction <add>, %45, %cst_31 [1] : vector<16x32xf32> to vector<16xf32>
    %47 = vector.shape_cast %46 : vector<16xf32> to vector<16x1xf32>
    %48 = arith.maximumf %44, %47 : vector<16x1xf32>
    %49 = arith.subf %44, %48 : vector<16x1xf32>
    %50 = math.exp %49 : vector<16x1xf32>
    %51 = arith.subf %47, %48 : vector<16x1xf32>
    %52 = math.exp %51 : vector<16x1xf32>
    %53 = arith.addf %50, %52 : vector<16x1xf32>
    %54 = tpu.reciprocal %53 {approx = true} : vector<16x1xf32> -> vector<16x1xf32>
    %55 = vector.extract_strided_slice %35 {offsets = [0, 0], sizes = [16, 32], strides = [1, 1]} : vector<16x64xf32> to vector<16x32xf32>
    %56 = vector.extract_strided_slice %35 {offsets = [0, 32], sizes = [16, 32], strides = [1, 1]} : vector<16x64xf32> to vector<16x32xf32>
    %57 = vector.broadcast %50 : vector<16x1xf32> to vector<16x32xf32>
    %58 = arith.mulf %57, %55 : vector<16x32xf32>
    %59 = vector.broadcast %52 : vector<16x1xf32> to vector<16x32xf32>
    %60 = arith.mulf %59, %56 : vector<16x32xf32>
    %61 = arith.addf %58, %60 : vector<16x32xf32>
    %62 = vector.broadcast %54 : vector<16x1xf32> to vector<16x32xf32>
    %63 = arith.mulf %61, %62 : vector<16x32xf32>
    %cst_32 = arith.constant dense<0.000000e+00> : vector<16x16xf32>
    %64 = tpu.matmul %63, %6, %cst_32 {dimension_numbers = #tpu.dot_dimension_numbers<[1], [0], [0], [1], [0, 0, 1, 1], [], []>} : vector<16x32xf32>, vector<32x16xf32>, vector<16x16xf32> -> vector<16x16xf32>
    %cst_33 = arith.constant dense<0.000000e+00> : vector<16x16xf32>
    %65 = tpu.matmul %13, %64, %cst_33 {dimension_numbers = #tpu.dot_dimension_numbers<[1], [0], [0], [1], [0, 0, 1, 1], [], []>} : vector<16x16xf32>, vector<16x16xf32>, vector<16x16xf32> -> vector<16x16xf32>
    %cst_34 = arith.constant 0.000000e+00 : f32
    %66 = vector.broadcast %cst_34 : f32 to vector<16x16xf32>
    %67 = arith.maximumf %65, %66 : vector<16x16xf32>
    %cst_35 = arith.constant dense<0.000000e+00> : vector<16x16xf32>
    %68 = tpu.matmul %67, %67, %cst_35 {dimension_numbers = #tpu.dot_dimension_numbers<[1], [1], [0], [0], [0, 0, 1, 0], [], []>} : vector<16x16xf32>, vector<16x16xf32>, vector<16x16xf32> -> vector<16x16xf32>
    %69 = arith.negf %68 : vector<16x16xf32>
    %70 = math.exp %69 : vector<16x16xf32>
    %cst_36 = arith.constant 1.000000e+00 : f32
    %71 = vector.broadcast %cst_36 : f32 to vector<16x16xf32>
    %72 = arith.addf %71, %70 : vector<16x16xf32>
    %73 = arith.divf %71, %72 : vector<16x16xf32>
    %c0_37 = arith.constant 0 : index
    %c0_38 = arith.constant 0 : index
    %74 = vector.load %arg7[%c0_37, %c0_38] : memref<16x16xf32, #tpu.memory_space<vmem>>, vector<16x16xf32>
    tpu.vector_store %arg7[%c0_37, %c0_38], %73 {strides = array<i32>} : memref<16x16xf32, #tpu.memory_space<vmem>>, vector<16x16xf32>,
    return
  }
  func.func @transform_0(%arg0: i32) -> (i32, i32) {
    %c0_i32 = arith.constant 0 : i32
    %c0_i32_0 = arith.constant 0 : i32
    %c0_i32_1 = arith.constant 0 : i32
    return %c0_i32, %c0_i32_0 : i32, i32
  }
  func.func @transform_1(%arg0: i32) -> (i32, i32) {
    %c0_i32 = arith.constant 0 : i32
    %c0_i32_0 = arith.constant 0 : i32
    %c0_i32_1 = arith.constant 0 : i32
    return %c0_i32, %c0_i32_0 : i32, i32
  }
  func.func @transform_2(%arg0: i32) -> (i32, i32) {
    %c0_i32 = arith.constant 0 : i32
    %c0_i32_0 = arith.constant 0 : i32
    %c0_i32_1 = arith.constant 0 : i32
    return %c0_i32, %c0_i32_0 : i32, i32
  }
  func.func @transform_3(%arg0: i32) -> (i32, i32) {
    %c0_i32 = arith.constant 0 : i32
    %c0_i32_0 = arith.constant 0 : i32
    %c0_i32_1 = arith.constant 0 : i32
    return %c0_i32, %c0_i32_0 : i32, i32
  }
  func.func @transform_4(%arg0: i32) -> (i32, i32) {
    %c0_i32 = arith.constant 0 : i32
    %c0_i32_0 = arith.constant 0 : i32
    %c0_i32_1 = arith.constant 0 : i32
    return %c0_i32, %c0_i32_0 : i32, i32
  }
  func.func @transform_5(%arg0: i32) -> (i32, i32) {
    %c0_i32 = arith.constant 0 : i32
    %c0_i32_0 = arith.constant 0 : i32
    %c0_i32_1 = arith.constant 0 : i32
    return %c0_i32, %c0_i32_0 : i32, i32
  }
  func.func @transform_6(%arg0: i32) -> (i32, i32) {
    %c0_i32 = arith.constant 0 : i32
    %c0_i32_0 = arith.constant 0 : i32
    %c0_i32_1 = arith.constant 0 : i32
    return %c0_i32, %c0_i32_0 : i32, i32
  }
}

</mosaic_0001>

<llo_original>
// kernel: grafrank_model_ae_forward.1
$region0: #{grafrank_model_ae_forward.1}
  #allocation0 [shape = 'u32[]', space=smem, size = 0x4, offset = 0x4, fixed_abs, tag = 'smem constant byte address 0x4 - core index']
  #allocation1 [shape = 'u32[72,128]{1,0:T(1,128)}', space=vmem, size = 0x9000, scoped, tag = 'internal scratch']
  %s0 = inlined_call_operand.vmem [shape: f32[16,40], index: 0, kind: input, shape index: {}]
  %s1 = inlined_call_operand.vmem [shape: f32[16,16], index: 1, kind: input, shape index: {}]
  %s2 = inlined_call_operand.vmem [shape: f32[16,48], index: 2, kind: input, shape index: {}]
  %s3 = inlined_call_operand.vmem [shape: f32[48,8], index: 3, kind: input, shape index: {}]
  %s4 = inlined_call_operand.vmem [shape: f32[16,16], index: 4, kind: input, shape index: {}]
  %s5 = inlined_call_operand.vmem [shape: f32[320,128], index: 5, kind: input, shape index: {}]
  %s6 = inlined_call_operand.hbm [shape: f32[16,16], index: 6, kind: output, shape index: {}]
  %s7 = sld [smem:[#allocation0]]
  $region34: #{grafrank_model_ae_forward.1} parent=0
    _
  %s9 = ssub.s32 1, %s7
  %s10 = scalar_select 0, %s9, %s7
  $region1: #{grafrank_model_ae_forward.1} parent=0
    #allocation2 [shape = 'u8[8192]{0}', space=vmem, size = 0x2000, scoped, tag = 'output window, operand 0, single buffered']
    #allocation3 [shape = 's32[1]{0}', space=sflag, size = 0x4, scoped, tag = 'scoped memory for grafrank_model_ae_forward.1']
    %11 = vsyncpa [#allocation3], 0
    // Predicated region
    $region2: #{grafrank_model_ae_forward.1} parent=1 // pred_check
      _
    $region3: #{grafrank_model_ae_forward.1} parent=1 // pred_check_branch
      %13 = sbr.rel (0) target = $region5
    $region4: #{grafrank_model_ae_forward.1} parent=1 // pred_region
      _
    $region5: #{grafrank_model_ae_forward.1} parent=1 // pred_fallthru
      _
    // Predicated region
    $region6: #{grafrank_model_ae_forward.1} parent=1 // pred_check
      _
    $region7: #{grafrank_model_ae_forward.1} parent=1 // pred_check_branch
      %15 = sbr.rel (0) target = $region9
    $region8: #{grafrank_model_ae_forward.1} parent=1 // pred_region
      _
    $region9: #{grafrank_model_ae_forward.1} parent=1 // pred_fallthru
      _
    // Predicated region
    $region10: #{grafrank_model_ae_forward.1} parent=1 // pred_check
      _
    $region11: #{grafrank_model_ae_forward.1} parent=1 // pred_check_branch
      %17 = sbr.rel (0) target = $region13
    $region12: #{grafrank_model_ae_forward.1} parent=1 // pred_region
      _
    $region13: #{grafrank_model_ae_forward.1} parent=1 // pred_fallthru
      _
    // Predicated region
    $region14: #{grafrank_model_ae_forward.1} parent=1 // pred_check
      _
    $region15: #{grafrank_model_ae_forward.1} parent=1 // pred_check_branch
      %19 = sbr.rel (0) target = $region17
    $region16: #{grafrank_model_ae_forward.1} parent=1 // pred_region
      _
    $region17: #{grafrank_model_ae_forward.1} parent=1 // pred_fallthru
      _
    // Predicated region
    $region18: #{grafrank_model_ae_forward.1} parent=1 // pred_check
      _
    $region19: #{grafrank_model_ae_forward.1} parent=1 // pred_check_branch
      %21 = sbr.rel (0) target = $region21
    $region20: #{grafrank_model_ae_forward.1} parent=1 // pred_region
      _
    $region21: #{grafrank_model_ae_forward.1} parent=1 // pred_fallthru
      _
    // Predicated region
    $region22: #{grafrank_model_ae_forward.1} parent=1 // pred_check
      _
    $region23: #{grafrank_model_ae_forward.1} parent=1 // pred_check_branch
      %23 = sbr.rel (0) target = $region25
    $region24: #{grafrank_model_ae_forward.1} parent=1 // pred_region
      _
    $region25: #{grafrank_model_ae_forward.1} parent=1 // pred_fallthru
      _
    %v24 = vld [vmem:[%s5] sm:$0xff]
    %v25 = vld [vmem:[%s5 + $0x8] sm:$0xff]
    %v26 = vld [vmem:[%s5 + $0x10] sm:$0xff]
    %v27 = vld [vmem:[%s5 + $0x18] sm:$0xff]
    %v28 = vld [vmem:[%s5 + $0x20] sm:$0xff]
    %v29 = vld [vmem:[%s5 + $0x28] sm:$0xff]
    %v30 = vld [vmem:[%s5 + $0x30] sm:$0xff]
    %v31 = vld [vmem:[%s5 + $0x38] sm:$0xff]
    %v32 = vld [vmem:[%s5 + $0x40] sm:$0xff]
    %v33 = vld [vmem:[%s5 + $0x48] sm:$0xff]
    %v34 = vld [vmem:[%s5 + $0x50] sm:$0xff]
    %v35 = vld [vmem:[%s5 + $0x58] sm:$0xff]
    %v36 = vld [vmem:[%s5 + $0x60] sm:$0xff]
    %v37 = vld [vmem:[%s5 + $0x68] sm:$0xff]
    %v38 = vld [vmem:[%s5 + $0x70] sm:$0xff]
    %v39 = vld [vmem:[%s5 + $0x78] sm:$0xff]
    %v40 = vld [vmem:[%s5 + $0x80] sm:$0xff]
    %v41 = vld [vmem:[%s5 + $0x88] sm:$0xff]
    %v42 = vld [vmem:[%s5 + $0x90] sm:$0xff]
    %v43 = vld [vmem:[%s5 + $0x98] sm:$0xff]
    %v44 = vld [vmem:[%s5 + $0xa0] sm:$0xff]
    %v45 = vld [vmem:[%s5 + $0xa8] sm:$0xff]
    %v46 = vld [vmem:[%s5 + $0xb0] sm:$0xff]
    %v47 = vld [vmem:[%s5 + $0xb8] sm:$0xff]
    %v48 = vld [vmem:[%s5 + $0xc0] sm:$0xff]
    %v49 = vld [vmem:[%s5 + $0xc8] sm:$0xff]
    %v50 = vld [vmem:[%s5 + $0xd0] sm:$0xff]
    %v51 = vld [vmem:[%s5 + $0xd8] sm:$0xff]
    %v52 = vld [vmem:[%s5 + $0xe0] sm:$0xff]
    %v53 = vld [vmem:[%s5 + $0xe8] sm:$0xff]
    %v54 = vld [vmem:[%s5 + $0xf0] sm:$0xff]
    %v55 = vld [vmem:[%s5 + $0xf8] sm:$0xff]
    %v56 = vld [vmem:[%s5 + $0x100] sm:$0xff]
    %v57 = vld [vmem:[%s5 + $0x108] sm:$0xff]
    %v58 = vld [vmem:[%s5 + $0x110] sm:$0xff]
    %v59 = vld [vmem:[%s5 + $0x118] sm:$0xff]
    %v60 = vld [vmem:[%s5 + $0x120] sm:$0xff]
    %v61 = vld [vmem:[%s5 + $0x128] sm:$0xff]
    %v62 = vld [vmem:[%s5 + $0x130] sm:$0xff]
    %v63 = vld [vmem:[%s5 + $0x138] sm:$0x1]
    %v64 = vld [vmem:[%s5 + $0x139] sm:$0x1]
    %v65 = vld [vmem:[%s5 + $0x13a] sm:$0x1]
    %v66 = vld [vmem:[%s5 + $0x13b] sm:$0x1]
    %v67 = vld [vmem:[%s0] sm:$0xff]
    %v68 = vld [vmem:[%s0 + $0x8] sm:$0xff]
    %v69 = vld [vmem:[%s1] sm:$0xff]
    %v70 = vld [vmem:[%s1 + $0x8] sm:$0xff]
    %v71 = vld [vmem:[%s4] sm:$0xff]
    %v72 = vld [vmem:[%s4 + $0x8] sm:$0xff]
    %v73 = vld [vmem:[%s2] sm:$0xff]
    %v74 = vld [vmem:[%s2 + $0x8] sm:$0xff]
    %v75 = vld [vmem:[%s3] sm:$0xff]
    %v76 = vld [vmem:[%s3 + $0x8] sm:$0xff]
    %v77 = vld [vmem:[%s3 + $0x10] sm:$0xff]
    %v78 = vld [vmem:[%s3 + $0x18] sm:$0xff]
    %v79 = vld [vmem:[%s3 + $0x20] sm:$0xff]
    %v80 = vld [vmem:[%s3 + $0x28] sm:$0xff]
    %vm81 = vcmask 392192
    %v83 = vsel %vm81, %v73, 0
    %v86 = vsel %vm81, %v74, 0
    %88 = vmatpush.msra.mxu0 0.0
    %89 = vmatpush.msra.mxu0 0.0
    %90 = vmatpush.msra.mxu0 0.0
    %91 = vmatpush.msra.mxu0 0.0
    %92 = vmatpush.msra.mxu0 0.0
    %93 = vmatpush.msra.mxu0 0.0
    %94 = vmatpush.msra.mxu0 0.0
    %95 = vmatpush.msra.mxu0 0.0
    %96 = vmatpush.msra.mxu0 0.0
    %97 = vmatpush.msra.mxu0 0.0
    %98 = vmatpush.msra.mxu0 %v80
    %99 = vmatpush.msra.mxu0 %v79
    %100 = vmatpush.msra.mxu0 %v78
    %101 = vmatpush.msra.mxu0 %v77
    %102 = vmatpush.msra.mxu0 %v76
    %103 = vmatpush.msra.mxu0 %v75
    %104 = vmatmul.f32.gmra.mxu0 %v83
    %v105 = vpop.f32.mrf.mxu0
    %v106 = vadd.f32 0.0, %v105
    %107 = vmatmul.f32.gmra.mxu0 %v86
    %v108 = vpop.f32.mrf.mxu0
    %v109 = vadd.f32 0.0, %v108
    %110 = vdwg.mxu0
    %vm111 = vcmask 64512
    %v113 = vsel %vm111, %v106, 0
    %v116 = vsel %vm111, %v109, 0
    %118 = vmatpush.msra.mxu0 0.0
    %119 = vmatpush.msra.mxu0 0.0
    %120 = vmatpush.msra.mxu0 0.0
    %121 = vmatpush.msra.mxu0 0.0
    %122 = vmatpush.msra.mxu0 0.0
    %123 = vmatpush.msra.mxu0 0.0
    %124 = vmatpush.msra.mxu0 0.0
    %125 = vmatpush.msra.mxu0 0.0
    %126 = vmatpush.msra.mxu0 0.0
    %127 = vmatpush.msra.mxu0 0.0
    %128 = vmatpush.msra.mxu0 0.0
    %129 = vmatpush.msra.mxu0 0.0
    %130 = vmatpush.msra.mxu0 0.0
    %131 = vmatpush.msra.mxu0 0.0
    %132 = vmatpush.msra.mxu0 0.0
    %133 = vmatpush.msra.mxu0 %v24
    %134 = vmatmul.f32.gmra.mxu0 %v113
    %v135 = vpop.f32.mrf.mxu0
    %v136 = vadd.f32 0.0, %v135
    %137 = vmatmul.f32.gmra.mxu0 %v116
    %v138 = vpop.f32.mrf.mxu0
    %v139 = vadd.f32 0.0, %v138
    %140 = vdwg.mxu0
    %vm141 = vcmask 130048
    %v143 = vsel %vm141, %v69, 0
    %v146 = vsel %vm141, %v70, 0
    %148 = vmatpush.msra.mxu0 0.0
    %149 = vmatpush.msra.mxu0 0.0
    %150 = vmatpush.msra.mxu0 0.0
    %151 = vmatpush.msra.mxu0 0.0
    %152 = vmatpush.msra.mxu0 0.0
    %153 = vmatpush.msra.mxu0 0.0
    %154 = vmatpush.msra.mxu0 0.0
    %155 = vmatpush.msra.mxu0 0.0
    %156 = vmatpush.msra.mxu0 0.0
    %157 = vmatpush.msra.mxu0 0.0
    %158 = vmatpush.msra.mxu0 0.0
    %159 = vmatpush.msra.mxu0 0.0
    %160 = vmatpush.msra.mxu0 0.0
    %161 = vmatpush.msra.mxu0 0.0
    %162 = vmatpush.msra.mxu0 %v68
    %163 = vmatpush.msra.mxu0 %v67
    %164 = vmatmul.f32.gmra.mxu0 %v143
    %v165 = vpop.f32.mrf.mxu0
    %v166 = vadd.f32 0.0, %v165
    %167 = vmatmul.f32.gmra.mxu0 %v146
    %v168 = vpop.f32.mrf.mxu0
    %v169 = vadd.f32 0.0, %v168
    %170 = vdwg.mxu0
    %vm171 = vcmask 326656
    %v173 = vsel %vm171, %v67, 0
    %v176 = vsel %vm171, %v68, 0
    %178 = vmatpush.msra.mxu0 0.0
    %179 = vmatpush.msra.mxu0 0.0
    %180 = vmatpush.msra.mxu0 0.0
    %181 = vmatpush.msra.mxu0 0.0
    %182 = vmatpush.msra.mxu0 0.0
    %183 = vmatpush.msra.mxu0 0.0
    %184 = vmatpush.msra.mxu0 0.0
    %185 = vmatpush.msra.mxu0 0.0
    %186 = vmatpush.msra.mxu0 0.0
    %187 = vmatpush.msra.mxu0 0.0
    %188 = vmatpush.msra.mxu0 0.0
    %189 = vmatpush.msra.mxu0 %v34
    %190 = vmatpush.msra.mxu0 %v33
    %191 = vmatpush.msra.mxu0 %v32
    %192 = vmatpush.msra.mxu0 %v31
    %193 = vmatpush.msra.mxu0 %v30
    %194 = vmatmul.f32.gmra.mxu0 %v173
    %v195 = vpop.f32.mrf.mxu0
    %v196 = vadd.f32 0.0, %v195
    %197 = vmatmul.f32.gmra.mxu0 %v176
    %v198 = vpop.f32.mrf.mxu0
    %v199 = vadd.f32 0.0, %v198
    %200 = vdwg.mxu0
    %v202 = vsel %vm171, %v166, 0
    %v205 = vsel %vm171, %v169, 0
    %207 = vmatpush.msra.mxu0 0.0
    %208 = vmatpush.msra.mxu0 0.0
    %209 = vmatpush.msra.mxu0 0.0
    %210 = vmatpush.msra.mxu0 0.0
    %211 = vmatpush.msra.mxu0 0.0
    %212 = vmatpush.msra.mxu0 0.0
    %213 = vmatpush.msra.mxu0 0.0
    %214 = vmatpush.msra.mxu0 0.0
    %215 = vmatpush.msra.mxu0 0.0
    %216 = vmatpush.msra.mxu0 0.0
    %217 = vmatpush.msra.mxu0 0.0
    %218 = vmatpush.msra.mxu0 %v29
    %219 = vmatpush.msra.mxu0 %v28
    %220 = vmatpush.msra.mxu0 %v27
    %221 = vmatpush.msra.mxu0 %v26
    %222 = vmatpush.msra.mxu0 %v25
    %223 = vmatmul.f32.gmra.mxu0 %v202
    %v224 = vpop.f32.mrf.mxu0
    %v225 = vadd.f32 %v196, %v224
    %226 = vmatmul.f32.gmra.mxu0 %v205
    %v227 = vpop.f32.mrf.mxu0
    %v228 = vadd.f32 %v199, %v227
    %229 = vdwg.mxu0
    %v230 = vadd.f32 %v225, %v136
    %v231 = vadd.f32 %v228, %v139
    %v232 = vperm.slane %v63, 0
    %v233 = vadd.f32 %v230, %v232
    %v234 = vadd.f32 %v231, %v232
    %v235 = vmax.f32 %v233, 0.0
    %v236 = vmax.f32 %v234, 0.0
    %237 = vmatpush.msra.mxu0 0.0
    %238 = vmatpush.msra.mxu0 0.0
    %239 = vmatpush.msra.mxu0 0.0
    %240 = vmatpush.msra.mxu0 0.0
    %241 = vmatpush.msra.mxu0 0.0
    %242 = vmatpush.msra.mxu0 0.0
    %243 = vmatpush.msra.mxu0 0.0
    %244 = vmatpush.msra.mxu0 0.0
    %245 = vmatpush.msra.mxu0 0.0
    %246 = vmatpush.msra.mxu0 0.0
    %247 = vmatpush.msra.mxu0 0.0
    %248 = vmatpush.msra.mxu0 0.0
    %249 = vmatpush.msra.mxu0 0.0
    %250 = vmatpush.msra.mxu0 0.0
    %251 = vmatpush.msra.mxu0 %v236
    %252 = vmatpush.msra.mxu0 %v235
    %253 = vmatmul.f32.gmra.mxu0 %v143
    %v254 = vpop.f32.mrf.mxu0
    %v255 = vadd.f32 0.0, %v254
    %256 = vmatmul.f32.gmra.mxu0 %v146
    %v257 = vpop.f32.mrf.mxu0
    %v258 = vadd.f32 0.0, %v257
    %259 = vdwg.mxu0
    %vm260 = vcmask 523264
    %v262 = vsel %vm260, %v235, 0
    %v265 = vsel %vm260, %v236, 0
    %267 = vmatpush.msra.mxu0 0.0
    %268 = vmatpush.msra.mxu0 0.0
    %269 = vmatpush.msra.mxu0 0.0
    %270 = vmatpush.msra.mxu0 0.0
    %271 = vmatpush.msra.mxu0 0.0
    %272 = vmatpush.msra.mxu0 0.0
    %273 = vmatpush.msra.mxu0 0.0
    %274 = vmatpush.msra.mxu0 0.0
    %275 = vmatpush.msra.mxu0 %v50
    %276 = vmatpush.msra.mxu0 %v49
    %277 = vmatpush.msra.mxu0 %v48
    %278 = vmatpush.msra.mxu0 %v47
    %279 = vmatpush.msra.mxu0 %v46
    %280 = vmatpush.msra.mxu0 %v45
    %281 = vmatpush.msra.mxu0 %v44
    %282 = vmatpush.msra.mxu0 %v43
    %283 = vmatmul.f32.gmra.mxu0 %v262
    %v284 = vpop.f32.mrf.mxu0
    %v285 = vadd.f32 0.0, %v284
    %286 = vmatmul.f32.gmra.mxu0 %v265
    %v287 = vpop.f32.mrf.mxu0
    %v288 = vadd.f32 0.0, %v287
    %289 = vdwg.mxu0
    %v291 = vsel %vm260, %v255, 0
    %v294 = vsel %vm260, %v258, 0
    %296 = vmatpush.msra.mxu0 0.0
    %297 = vmatpush.msra.mxu0 0.0
    %298 = vmatpush.msra.mxu0 0.0
    %299 = vmatpush.msra.mxu0 0.0
    %300 = vmatpush.msra.mxu0 0.0
    %301 = vmatpush.msra.mxu0 0.0
    %302 = vmatpush.msra.mxu0 0.0
    %303 = vmatpush.msra.mxu0 0.0
    %304 = vmatpush.msra.mxu0 %v42
    %305 = vmatpush.msra.mxu0 %v41
    %306 = vmatpush.msra.mxu0 %v40
    %307 = vmatpush.msra.mxu0 %v39
    %308 = vmatpush.msra.mxu0 %v38
    %309 = vmatpush.msra.mxu0 %v37
    %310 = vmatpush.msra.mxu0 %v36
    %311 = vmatpush.msra.mxu0 %v35
    %312 = vmatmul.f32.gmra.mxu0 %v291
    %v313 = vpop.f32.mrf.mxu0
    %v314 = vadd.f32 %v285, %v313
    %315 = vmatmul.f32.gmra.mxu0 %v294
    %v316 = vpop.f32.mrf.mxu0
    %v317 = vadd.f32 %v288, %v316
    %318 = vdwg.mxu0
    %321 = vrot.lane.b32.xlu0 %v136, 64
    %v322 = vpop.permute.xlu0 %321
    %323 = vrot.lane.b32.xlu0 %v139, 64
    %v324 = vpop.permute.xlu0 %323
    %v327 = vadd.f32 %v314, %v322
    %v328 = vadd.f32 %v317, %v324
    %v329 = vperm.slane %v64, 0
    %v330 = vadd.f32 %v327, %v329
    %v331 = vadd.f32 %v328, %v329
    %v332 = vperm.slane %v65, 0
    %v334 = vsel %vm260, %v330, 0
    %v337 = vsel %vm260, %v331, 0
    %339 = vmatpush.msra.mxu0 0.0
    %340 = vmatpush.msra.mxu0 0.0
    %341 = vmatpush.msra.mxu0 0.0
    %342 = vmatpush.msra.mxu0 0.0
    %343 = vmatpush.msra.mxu0 0.0
    %344 = vmatpush.msra.mxu0 0.0
    %345 = vmatpush.msra.mxu0 0.0
    %346 = vmatpush.msra.mxu0 0.0
    %347 = vmatpush.msra.mxu0 %v58
    %348 = vmatpush.msra.mxu0 %v57
    %349 = vmatpush.msra.mxu0 %v56
    %350 = vmatpush.msra.mxu0 %v55
    %351 = vmatpush.msra.mxu0 %v54
    %352 = vmatpush.msra.mxu0 %v53
    %353 = vmatpush.msra.mxu0 %v52
    %354 = vmatpush.msra.mxu0 %v51
    %355 = vmatmul.f32.gmra.mxu0 %v334
    %v356 = vpop.f32.mrf.mxu0
    %v357 = vadd.f32 %v332, %v356
    %358 = vmatmul.f32.gmra.mxu0 %v337
    %v359 = vpop.f32.mrf.mxu0
    %v360 = vadd.f32 %v332, %v359
    %361 = vdwg.mxu0
    %v362 = vtanh.pop %v357
    %v363 = vtanh.pop %v360
    %v364 = vperm.slane %v66, 0
    %v365 = vmul.f32 %v362, %v364
    %v366 = vmul.f32 %v363, %v364
    %vm367 = vcmask 261120
    %v368 = vsel %vm367, %v365, 0.0
    %369 = vadd.xlane.f32.xlu0 %v368
    %v370 = vpop.xlane.xlu0 %369
    %v371 = vsel %vm367, %v366, 0.0
    %372 = vadd.xlane.f32.xlu0 %v371
    %v373 = vpop.xlane.xlu0 %372
    %376 = vrot.lane.b32.xlu0 %v365, 96
    %v377 = vpop.permute.xlu0 %376
    %378 = vrot.lane.b32.xlu0 %v366, 96
    %v379 = vpop.permute.xlu0 %378
    %v382 = vsel %vm367, %v377, 0.0
    %383 = vadd.xlane.f32.xlu0 %v382
    %v384 = vpop.xlane.xlu0 %383
    %v385 = vsel %vm367, %v379, 0.0
    %386 = vadd.xlane.f32.xlu0 %v385
    %v387 = vpop.xlane.xlu0 %386
    %v388 = vmax.f32 %v370, %v384
    %v389 = vmax.f32 %v373, %v387
    %v390 = vsub.f32 %v370, %v388
    %v391 = vsub.f32 %v373, %v389
    %v392 = vmul.f32 %v390, 1.442695
    %v393 = vpow.pop %v392
    %v394 = vmul.f32 %v391, 1.442695
    %v395 = vpow.pop %v394
    %v396 = vsub.f32 %v384, %v388
    %v397 = vsub.f32 %v387, %v389
    %v398 = vmul.f32 %v396, 1.442695
    %v399 = vpow.pop %v398
    %v400 = vmul.f32 %v397, 1.442695
    %v401 = vpow.pop %v400
    %v402 = vadd.f32 %v393, %v399
    %v403 = vadd.f32 %v395, %v401
    %v404 = vrcp.pop %v402
    %v405 = vrcp.pop %v403
    %v406 = vmul.f32 %v393, %v330
    %v407 = vmul.f32 %v395, %v331
    %v408 = vmul.f32 %v399, %v330
    %v409 = vmul.f32 %v401, %v331
    %412 = vrot.lane.b32.xlu0 %v408, 96
    %v413 = vpop.permute.xlu0 %412
    %414 = vrot.lane.b32.xlu0 %v409, 96
    %v415 = vpop.permute.xlu0 %414
    %v418 = vadd.f32 %v406, %v413
    %v419 = vadd.f32 %v407, %v415
    %v420 = vmul.f32 %v418, %v404
    %v421 = vmul.f32 %v419, %v405
    %v423 = vsel %vm367, %v420, 0
    %v426 = vsel %vm367, %v421, 0
    %428 = vmatpush.msra.mxu0 0.0
    %429 = vmatpush.msra.mxu0 0.0
    %430 = vmatpush.msra.mxu0 0.0
    %431 = vmatpush.msra.mxu0 0.0
    %432 = vmatpush.msra.mxu0 0.0
    %433 = vmatpush.msra.mxu0 0.0
    %434 = vmatpush.msra.mxu0 0.0
    %435 = vmatpush.msra.mxu0 0.0
    %436 = vmatpush.msra.mxu0 0.0
    %437 = vmatpush.msra.mxu0 0.0
    %438 = vmatpush.msra.mxu0 0.0
    %439 = vmatpush.msra.mxu0 0.0
    %440 = vmatpush.msra.mxu0 %v62
    %441 = vmatpush.msra.mxu0 %v61
    %442 = vmatpush.msra.mxu0 %v60
    %443 = vmatpush.msra.mxu0 %v59
    %444 = vmatmul.f32.gmra.mxu0 %v423
    %v445 = vpop.f32.mrf.mxu0
    %v446 = vadd.f32 0.0, %v445
    %447 = vmatmul.f32.gmra.mxu0 %v426
    %v448 = vpop.f32.mrf.mxu0
    %v449 = vadd.f32 0.0, %v448
    %450 = vdwg.mxu0
    %v452 = vsel %vm141, %v71, 0
    %v455 = vsel %vm141, %v72, 0
    %457 = vmatpush.msra.mxu0 0.0
    %458 = vmatpush.msra.mxu0 0.0
    %459 = vmatpush.msra.mxu0 0.0
    %460 = vmatpush.msra.mxu0 0.0
    %461 = vmatpush.msra.mxu0 0.0
    %462 = vmatpush.msra.mxu0 0.0
    %463 = vmatpush.msra.mxu0 0.0
    %464 = vmatpush.msra.mxu0 0.0
    %465 = vmatpush.msra.mxu0 0.0
    %466 = vmatpush.msra.mxu0 0.0
    %467 = vmatpush.msra.mxu0 0.0
    %468 = vmatpush.msra.mxu0 0.0
    %469 = vmatpush.msra.mxu0 0.0
    %470 = vmatpush.msra.mxu0 0.0
    %471 = vmatpush.msra.mxu0 %v449
    %472 = vmatpush.msra.mxu0 %v446
    %473 = vmatmul.f32.gmra.mxu0 %v452
    %v474 = vpop.f32.mrf.mxu0
    %v475 = vadd.f32 0.0, %v474
    %476 = vmatmul.f32.gmra.mxu0 %v455
    %v477 = vpop.f32.mrf.mxu0
    %v478 = vadd.f32 0.0, %v477
    %479 = vdwg.mxu0
    %v480 = vmax.f32 %v475, 0.0
    %v481 = vmax.f32 %v478, 0.0
    %v483 = vsel %vm141, %v480, 0
    %v486 = vsel %vm141, %v481, 0
    %488 = vmatpush.xpose.msra.mxu0 0.0
    %489 = vmatpush.xpose.msra.mxu0 0.0
    %490 = vmatpush.xpose.msra.mxu0 0.0
    %491 = vmatpush.xpose.msra.mxu0 0.0
    %492 = vmatpush.xpose.msra.mxu0 0.0
    %493 = vmatpush.xpose.msra.mxu0 0.0
    %494 = vmatpush.xpose.msra.mxu0 0.0
    %495 = vmatpush.xpose.msra.mxu0 0.0
    %496 = vmatpush.xpose.msra.mxu0 0.0
    %497 = vmatpush.xpose.msra.mxu0 0.0
    %498 = vmatpush.xpose.msra.mxu0 0.0
    %499 = vmatpush.xpose.msra.mxu0 0.0
    %500 = vmatpush.xpose.msra.mxu0 0.0
    %501 = vmatpush.xpose.msra.mxu0 0.0
    %502 = vmatpush.xpose.msra.mxu0 %v486
    %503 = vmatpush.xpose.msra.mxu0 %v483
    %504 = vmatmul.f32.gmra.mxu0 %v483
    %v505 = vpop.f32.mrf.mxu0
    %v506 = vadd.f32 0.0, %v505
    %507 = vmatmul.f32.gmra.mxu0 %v486
    %v508 = vpop.f32.mrf.mxu0
    %v509 = vadd.f32 0.0, %v508
    %510 = vdwg.mxu0
    %v511 = vxor.u32 %v506, 2147483648
    %v512 = vxor.u32 %v509, 2147483648
    %v513 = vmul.f32 %v511, 1.442695
    %v514 = vpow.pop %v513
    %v515 = vmul.f32 %v512, 1.442695
    %v516 = vpow.pop %v515
    %v517 = vadd.f32 %v514, 1.0
    %v518 = vadd.f32 %v516, 1.0
    %v519 = vrcp.pop %v517
    %v520 = vmul.f32 %v517, %v519
    %v521 = vsub.f32 1.0, %v520
    %v522 = vmul.f32 %v519, %v521
    %v523 = vadd.f32 %v519, %v522
    %vm524 = vweird.f32 %v517
    %vm525 = vweird.f32 %v519
    %vm526 = vmor %vm524, %vm525
    %v527 = vsel %vm526, %v519, %v523
    %v528 = vand.u32 2147483647, %v517
    %vm529 = vcmp.eq.f32.partialorder %v528, 8.507059e+37
    %v530 = vand.u32 %v517, 2147483648
    %v531 = vor.u32 1.1754944e-38, %v530
    %v532 = vsel %vm529, %v531, %v527
    %v533 = vmul.f32 1.0, %v532
    %v534 = vrcp.pop %v518
    %v535 = vmul.f32 %v518, %v534
    %v536 = vsub.f32 1.0, %v535
    %v537 = vmul.f32 %v534, %v536
    %v538 = vadd.f32 %v534, %v537
    %vm539 = vweird.f32 %v518
    %vm540 = vweird.f32 %v534
    %vm541 = vmor %vm539, %vm540
    %v542 = vsel %vm541, %v534, %v538
    %v543 = vand.u32 2147483647, %v518
    %vm544 = vcmp.eq.f32.partialorder %v543, 8.507059e+37
    %v545 = vand.u32 %v518, 2147483648
    %v546 = vor.u32 1.1754944e-38, %v545
    %v547 = vsel %vm544, %v546, %v542
    %v548 = vmul.f32 1.0, %v547
    %549 = vst.msk [vmem:[#allocation2] sm:$0xff] %vm141, %v533
    %550 = vst.msk [vmem:[#allocation2 + $0x8] sm:$0xff] %vm141, %v548
    // Predicated region
    $region26: #{grafrank_model_ae_forward.1} parent=1 // pred_check
      _
    $region27: #{grafrank_model_ae_forward.1} parent=1 // pred_check_branch
      %552 = sbr.rel (0) target = $region29
    $region28: #{grafrank_model_ae_forward.1} parent=1 // pred_region
      %554 = vsyncadd [#allocation3], 0
      %s555 = sshll.u32 [#allocation2], 4
      %s556 = int_to_ptr.vmem [resolvable:$true] %s555
      %s557 = sshll.u32 %s6, 4
      %s558 = int_to_ptr.hbm [resolvable:$true] %s557
      %563 = dma.vmem_to_hbm [thread:$0]  %s556, 256, %s558, [#allocation3], 128, 128, 8
    $region29: #{grafrank_model_ae_forward.1} parent=1 // pred_fallthru
      _
    // Predicated region
    $region30: #{grafrank_model_ae_forward.1} parent=1 // pred_check
      _
    $region31: #{grafrank_model_ae_forward.1} parent=1 // pred_check_branch
      %565 = sbr.rel (0) target = $region33
    $region32: #{grafrank_model_ae_forward.1} parent=1 // pred_region
      %567 = dma.done [#allocation3], 256
    $region33: #{grafrank_model_ae_forward.1} parent=1 // pred_fallthru
      _
    %568 = vsyncpa [#allocation3], 1

</llo_original>
